<compile_context>
chip_gen: v5e
topology: v5e:2x2
jax: 0.10.0
libtpu: 0.0.40
codegen_flags: <defaults>
</compile_context>

<pallas_src>
import functools

import jax
import jax.numpy as jnp
from jax.experimental import pallas as pl
from jax.experimental.pallas import tpu as pltpu

KERNEL = 3
STRIDE = 3  # torch.nn.MaxPool2d default: stride = kernel_size
# padding=0, ceil_mode=False (floor) as in the module.


def _maxpool_kernel(x_ref, o_ref, *, Ho, Wo):
    """x_ref: (Cb, H, W) raw input slab; o_ref: (Cb, Ho, Wo) pooled output."""
    # Row taps: rows kh, kh+S, kh+2S, ... for kh in [0, K). Sublane-strided
    # loads, reduced with an elementwise maximum chain (stays on the VALU).
    r = x_ref[:, pl.ds(0, Ho, stride=STRIDE), :]
    for kh in range(1, KERNEL):
        r = jnp.maximum(r, x_ref[:, pl.ds(kh, Ho, stride=STRIDE), :])
    # r: (Cb, Ho, W). Column taps: output column j pools the contiguous lane
    # window [S*j, S*j + K). The per-column stores are VMEM-side only (the
    # output block goes back to HBM as one dense DMA) and the output is 1/9 of
    # this op's HBM traffic, so they are not on the critical path.
    for j in range(Wo):
        window = r[:, :, STRIDE * j : STRIDE * j + KERNEL]
        o_ref[:, :, pl.ds(j, 1)] = jnp.max(window, axis=-1, keepdims=True)


def maxpool2d(x):
    """MaxPool2d(kernel_size=3, stride=3, padding=0, ceil_mode=False), NCHW."""
    N, C, H, W = x.shape
    Ho = (H - KERNEL) // STRIDE + 1  # ceil_mode=False -> floor
    Wo = (W - KERNEL) // STRIDE + 1
    G = N * C

    # Free reshape: merges contiguous leading dims, no data movement.
    xr = x.reshape(G, H, W)

    # Block as many (n, c) slices per grid step as fit a ~4 MiB input slab so
    # that (input + output) x 2 double-buffers stays under v5e's 16 MiB default
    # scoped VMEM (also comfortably fits v6e and v7x).
    itemsize = jnp.dtype(x.dtype).itemsize
    bytes_per_slice = (H * W + Ho * Wo) * itemsize
    budget = 4 * 1024 * 1024
    cb = max(1, budget // bytes_per_slice)
    if cb >= G:
        Cb = G                      # one block covers all (n, c) slices
    elif cb >= 8:
        Cb = (cb // 8) * 8          # keep the block's leading dim 8-aligned
    else:
        Cb = cb
    # Note: a single slice with very large H*W would additionally need a
    # spatial grid axis; not required for shapes this module is used with.

    out = pl.pallas_call(
        functools.partial(_maxpool_kernel, Ho=Ho, Wo=Wo),
        out_shape=jax.ShapeDtypeStruct((G, Ho, Wo), x.dtype),
        grid=(pl.cdiv(G, Cb),),
        in_specs=[pl.BlockSpec((Cb, H, W), lambda i: (i, 0, 0))],
        out_specs=pl.BlockSpec((Cb, Ho, Wo), lambda i: (i, 0, 0)),
        compiler_params=pltpu.CompilerParams(
            # Independent channel blocks: shardable across v7x's 2 TensorCores,
            # no-op on single-core v5e/v6e.
            dimension_semantics=("parallel",),
        ),
    )(xr)
    return out.reshape(N, C, Ho, Wo)  # free dim-split reshape


if __name__ == "__main__":
    key = jax.random.PRNGKey(0)
    # Small NCHW image batch consistent with the module's forward.
    x = jax.random.normal(key, (2, 4, 16, 16), dtype=jnp.float32)

    y = jax.jit(maxpool2d)(x)
    jax.block_until_ready(y)

    # Reference: same op in plain XLA. Max pooling only moves values, so the
    # comparison is exact.
    ref = jax.lax.reduce_window(
        x, -jnp.inf, jax.lax.max,
        (1, 1, KERNEL, KERNEL), (1, 1, STRIDE, STRIDE), "VALID",
    )
    assert y.shape == (2, 4, 5, 5), y.shape
    assert y.dtype == x.dtype
    assert jnp.array_equal(y, ref), "Pallas maxpool does not match reference"

    print("KERNEL_OK")
</pallas_src>

<mosaic_0001>
module attributes {stable_mosaic.version = 11 : i64} {
  func.func @_maxpool_kernel(%arg0: i32, %arg1: memref<8x16x16xf32, #tpu.memory_space<vmem>>, %arg2: memref<8x5x5xf32, #tpu.memory_space<vmem>>) attributes {dimension_semantics = [#tpu.dimension_semantics<parallel>], iteration_bounds = array<i64: 1>, scalar_prefetch = 0 : i64, scratch_operands = 0 : i64, tpu.core_type = #tpu.core_type<tc>, window_params = [{transform_indices = @transform_0, window_bounds = array<i64: 8, 16, 16>}, {transform_indices = @transform_1, window_bounds = array<i64: 8, 5, 5>}]} {
    %c0 = arith.constant 0 : index
    %c0_0 = arith.constant 0 : index
    %c0_1 = arith.constant 0 : index
    %0 = tpu.strided_load %arg1[%c0, %c0_0, %c0_1] {strides = array<i32: 1, 3, 1>} : memref<8x16x16xf32, #tpu.memory_space<vmem>>, vector<8x5x16xf32>
    %c0_2 = arith.constant 0 : index
    %c1 = arith.constant 1 : index
    %c0_3 = arith.constant 0 : index
    %1 = tpu.strided_load %arg1[%c0_2, %c1, %c0_3] {strides = array<i32: 1, 3, 1>} : memref<8x16x16xf32, #tpu.memory_space<vmem>>, vector<8x5x16xf32>
    %2 = arith.maximumf %0, %1 : vector<8x5x16xf32>
    %c0_4 = arith.constant 0 : index
    %c2 = arith.constant 2 : index
    %c0_5 = arith.constant 0 : index
    %3 = tpu.strided_load %arg1[%c0_4, %c2, %c0_5] {strides = array<i32: 1, 3, 1>} : memref<8x16x16xf32, #tpu.memory_space<vmem>>, vector<8x5x16xf32>
    %4 = arith.maximumf %2, %3 : vector<8x5x16xf32>
    %5 = vector.extract_strided_slice %4 {offsets = [0, 0, 0], sizes = [8, 5, 3], strides = [1, 1, 1]} : vector<8x5x16xf32> to vector<8x5x3xf32>
    %cst = arith.constant dense<0xFF800000> : vector<8x5xf32>
    %6 = vector.multi_reduction <maximumf>, %5, %cst [2] : vector<8x5x3xf32> to vector<8x5xf32>
    %7 = vector.shape_cast %6 : vector<8x5xf32> to vector<8x5x1xf32>
    %c0_6 = arith.constant 0 : index
    %c0_7 = arith.constant 0 : index
    %c0_8 = arith.constant 0 : index
    %8 = vector.load %arg2[%c0_6, %c0_7, %c0_8] : memref<8x5x5xf32, #tpu.memory_space<vmem>>, vector<8x5x1xf32>
    tpu.vector_store %arg2[%c0_6, %c0_7, %c0_8], %7 {strides = array<i32>} : memref<8x5x5xf32, #tpu.memory_space<vmem>>, vector<8x5x1xf32>,
    %9 = vector.extract_strided_slice %4 {offsets = [0, 0, 3], sizes = [8, 5, 3], strides = [1, 1, 1]} : vector<8x5x16xf32> to vector<8x5x3xf32>
    %cst_9 = arith.constant dense<0xFF800000> : vector<8x5xf32>
    %10 = vector.multi_reduction <maximumf>, %9, %cst_9 [2] : vector<8x5x3xf32> to vector<8x5xf32>
    %11 = vector.shape_cast %10 : vector<8x5xf32> to vector<8x5x1xf32>
    %c0_10 = arith.constant 0 : index
    %c0_11 = arith.constant 0 : index
    %c1_12 = arith.constant 1 : index
    %12 = vector.load %arg2[%c0_10, %c0_11, %c1_12] : memref<8x5x5xf32, #tpu.memory_space<vmem>>, vector<8x5x1xf32>
    tpu.vector_store %arg2[%c0_10, %c0_11, %c1_12], %11 {strides = array<i32>} : memref<8x5x5xf32, #tpu.memory_space<vmem>>, vector<8x5x1xf32>,
    %13 = vector.extract_strided_slice %4 {offsets = [0, 0, 6], sizes = [8, 5, 3], strides = [1, 1, 1]} : vector<8x5x16xf32> to vector<8x5x3xf32>
    %cst_13 = arith.constant dense<0xFF800000> : vector<8x5xf32>
    %14 = vector.multi_reduction <maximumf>, %13, %cst_13 [2] : vector<8x5x3xf32> to vector<8x5xf32>
    %15 = vector.shape_cast %14 : vector<8x5xf32> to vector<8x5x1xf32>
    %c0_14 = arith.constant 0 : index
    %c0_15 = arith.constant 0 : index
    %c2_16 = arith.constant 2 : index
    %16 = vector.load %arg2[%c0_14, %c0_15, %c2_16] : memref<8x5x5xf32, #tpu.memory_space<vmem>>, vector<8x5x1xf32>
    tpu.vector_store %arg2[%c0_14, %c0_15, %c2_16], %15 {strides = array<i32>} : memref<8x5x5xf32, #tpu.memory_space<vmem>>, vector<8x5x1xf32>,
    %17 = vector.extract_strided_slice %4 {offsets = [0, 0, 9], sizes = [8, 5, 3], strides = [1, 1, 1]} : vector<8x5x16xf32> to vector<8x5x3xf32>
    %cst_17 = arith.constant dense<0xFF800000> : vector<8x5xf32>
    %18 = vector.multi_reduction <maximumf>, %17, %cst_17 [2] : vector<8x5x3xf32> to vector<8x5xf32>
    %19 = vector.shape_cast %18 : vector<8x5xf32> to vector<8x5x1xf32>
    %c0_18 = arith.constant 0 : index
    %c0_19 = arith.constant 0 : index
    %c3 = arith.constant 3 : index
    %20 = vector.load %arg2[%c0_18, %c0_19, %c3] : memref<8x5x5xf32, #tpu.memory_space<vmem>>, vector<8x5x1xf32>
    tpu.vector_store %arg2[%c0_18, %c0_19, %c3], %19 {strides = array<i32>} : memref<8x5x5xf32, #tpu.memory_space<vmem>>, vector<8x5x1xf32>,
    %21 = vector.extract_strided_slice %4 {offsets = [0, 0, 12], sizes = [8, 5, 3], strides = [1, 1, 1]} : vector<8x5x16xf32> to vector<8x5x3xf32>
    %cst_20 = arith.constant dense<0xFF800000> : vector<8x5xf32>
    %22 = vector.multi_reduction <maximumf>, %21, %cst_20 [2] : vector<8x5x3xf32> to vector<8x5xf32>
    %23 = vector.shape_cast %22 : vector<8x5xf32> to vector<8x5x1xf32>
    %c0_21 = arith.constant 0 : index
    %c0_22 = arith.constant 0 : index
    %c4 = arith.constant 4 : index
    %24 = vector.load %arg2[%c0_21, %c0_22, %c4] : memref<8x5x5xf32, #tpu.memory_space<vmem>>, vector<8x5x1xf32>
    tpu.vector_store %arg2[%c0_21, %c0_22, %c4], %23 {strides = array<i32>} : memref<8x5x5xf32, #tpu.memory_space<vmem>>, vector<8x5x1xf32>,
    return
  }
  func.func @transform_0(%arg0: i32) -> (i32, i32, i32) {
    %c0_i32 = arith.constant 0 : i32
    %c0_i32_0 = arith.constant 0 : i32
    %c0_i32_1 = arith.constant 0 : i32
    return %arg0, %c0_i32, %c0_i32_0 : i32, i32, i32
  }
  func.func @transform_1(%arg0: i32) -> (i32, i32, i32) {
    %c0_i32 = arith.constant 0 : i32
    %c0_i32_0 = arith.constant 0 : i32
    %c0_i32_1 = arith.constant 0 : i32
    return %arg0, %c0_i32, %c0_i32_0 : i32, i32, i32
  }
}

</mosaic_0001>

<llo_original>
// kernel: maxpool2d.1
$region0: #{maxpool2d.1}
  #allocation0 [shape = 'u32[]', space=smem, size = 0x4, offset = 0x4, fixed_abs, tag = 'smem constant byte address 0x4 - core index']
  #allocation1 [shape = 'u32[72,128]{1,0:T(1,128)}', space=vmem, size = 0x9000, scoped, tag = 'internal scratch']
  %s0 = inlined_call_operand.hbm [shape: f32[8,16,16], index: 0, kind: input, shape index: {}]
  %s1 = inlined_call_operand.vmem [shape: f32[8,5,5], index: 1, kind: output, shape index: {}]
  %s2 = sld [smem:[#allocation0]]
  $region18: #{maxpool2d.1} parent=0
    _
  %s4 = ssub.s32 1, %s2
  %s5 = scalar_select 0, %s4, %s2
  $region1: #{maxpool2d.1} parent=0
    #allocation2 [shape = 'u8[65536]{0}', space=vmem, size = 0x10000, scoped, tag = 'input window, operand 0, single buffered']
    #allocation3 [shape = 's32[1]{0}', space=sflag, size = 0x4, scoped, tag = 'scoped memory for maxpool2d.1']
    %6 = vsyncpa [#allocation3], 0
    // Predicated region
    $region2: #{maxpool2d.1} parent=1 // pred_check
      _
    $region3: #{maxpool2d.1} parent=1 // pred_check_branch
      %8 = sbr.rel (0) target = $region5
    $region4: #{maxpool2d.1} parent=1 // pred_region
      %10 = vsyncadd [#allocation3], 0
      %s11 = sshll.u32 %s0, 4
      %s12 = int_to_ptr.hbm [resolvable:$true] %s11
      %s13 = sshll.u32 [#allocation2], 4
      %s14 = int_to_ptr.vmem [resolvable:$true] %s13
      %19 = dma.hbm_to_vmem [thread:$0]  %s12, 2048, %s14, [#allocation3], 128, 128, 8
    $region5: #{maxpool2d.1} parent=1 // pred_fallthru
      _
    // Predicated region
    $region6: #{maxpool2d.1} parent=1 // pred_check
      _
    $region7: #{maxpool2d.1} parent=1 // pred_check_branch
      %21 = sbr.rel (0) target = $region9
    $region8: #{maxpool2d.1} parent=1 // pred_region
      %23 = dma.done [#allocation3], 2048
    $region9: #{maxpool2d.1} parent=1 // pred_fallthru
      _
    %v24 = vld [vmem:[#allocation2] ss:$3 sm:$0x1f]
    %s25 = scalar_lea.vmem [#allocation2], 16
    %v26 = vld [vmem:[%s25] ss:$3 sm:$0x1f]
    %s27 = scalar_lea.vmem [#allocation2], 32
    %v28 = vld [vmem:[%s27] ss:$3 sm:$0x1f]
    %s29 = scalar_lea.vmem [#allocation2], 48
    %v30 = vld [vmem:[%s29] ss:$3 sm:$0x1f]
    %s31 = scalar_lea.vmem [#allocation2], 64
    %v32 = vld [vmem:[%s31] ss:$3 sm:$0x1f]
    %s33 = scalar_lea.vmem [#allocation2], 80
    %v34 = vld [vmem:[%s33] ss:$3 sm:$0x1f]
    %s35 = scalar_lea.vmem [#allocation2], 96
    %v36 = vld [vmem:[%s35] ss:$3 sm:$0x1f]
    %s37 = scalar_lea.vmem [#allocation2], 112
    %v38 = vld [vmem:[%s37] ss:$3 sm:$0x1f]
    %s39 = scalar_lea.vmem [#allocation2], 1
    %v40 = vld [vmem:[%s39] ss:$3 sm:$0x1f]
    %s41 = scalar_lea.vmem [#allocation2], 17
    %v42 = vld [vmem:[%s41] ss:$3 sm:$0x1f]
    %s43 = scalar_lea.vmem [#allocation2], 33
    %v44 = vld [vmem:[%s43] ss:$3 sm:$0x1f]
    %s45 = scalar_lea.vmem [#allocation2], 49
    %v46 = vld [vmem:[%s45] ss:$3 sm:$0x1f]
    %s47 = scalar_lea.vmem [#allocation2], 65
    %v48 = vld [vmem:[%s47] ss:$3 sm:$0x1f]
    %s49 = scalar_lea.vmem [#allocation2], 81
    %v50 = vld [vmem:[%s49] ss:$3 sm:$0x1f]
    %s51 = scalar_lea.vmem [#allocation2], 97
    %v52 = vld [vmem:[%s51] ss:$3 sm:$0x1f]
    %s53 = scalar_lea.vmem [#allocation2], 113
    %v54 = vld [vmem:[%s53] ss:$3 sm:$0x1f]
    %v55 = vmax.f32 %v24, %v40
    %v56 = vmax.f32 %v26, %v42
    %v57 = vmax.f32 %v28, %v44
    %v58 = vmax.f32 %v30, %v46
    %v59 = vmax.f32 %v32, %v48
    %v60 = vmax.f32 %v34, %v50
    %v61 = vmax.f32 %v36, %v52
    %v62 = vmax.f32 %v38, %v54
    %s63 = scalar_lea.vmem [#allocation2], 2
    %v64 = vld [vmem:[%s63] ss:$3 sm:$0x1f]
    %s65 = scalar_lea.vmem [#allocation2], 18
    %v66 = vld [vmem:[%s65] ss:$3 sm:$0x1f]
    %s67 = scalar_lea.vmem [#allocation2], 34
    %v68 = vld [vmem:[%s67] ss:$3 sm:$0x1f]
    %s69 = scalar_lea.vmem [#allocation2], 50
    %v70 = vld [vmem:[%s69] ss:$3 sm:$0x1f]
    %s71 = scalar_lea.vmem [#allocation2], 66
    %v72 = vld [vmem:[%s71] ss:$3 sm:$0x1f]
    %s73 = scalar_lea.vmem [#allocation2], 82
    %v74 = vld [vmem:[%s73] ss:$3 sm:$0x1f]
    %s75 = scalar_lea.vmem [#allocation2], 98
    %v76 = vld [vmem:[%s75] ss:$3 sm:$0x1f]
    %s77 = scalar_lea.vmem [#allocation2], 114
    %v78 = vld [vmem:[%s77] ss:$3 sm:$0x1f]
    %v79 = vmax.f32 %v55, %v64
    %v80 = vmax.f32 %v56, %v66
    %v81 = vmax.f32 %v57, %v68
    %v82 = vmax.f32 %v58, %v70
    %v83 = vmax.f32 %v59, %v72
    %v84 = vmax.f32 %v60, %v74
    %v85 = vmax.f32 %v61, %v76
    %v86 = vmax.f32 %v62, %v78
    %vm87 = vcmask 20480
    %v88 = vsel %vm87, %v79, -inf
    %89 = vmax.xlane.f32.xlu0 %v88
    %v90 = vpop.xlane.xlu0 %89
    %v91 = vsel %vm87, %v80, -inf
    %92 = vmax.xlane.f32.xlu0 %v91
    %v93 = vpop.xlane.xlu0 %92
    %v94 = vsel %vm87, %v81, -inf
    %95 = vmax.xlane.f32.xlu0 %v94
    %v96 = vpop.xlane.xlu0 %95
    %v97 = vsel %vm87, %v82, -inf
    %98 = vmax.xlane.f32.xlu0 %v97
    %v99 = vpop.xlane.xlu0 %98
    %v100 = vsel %vm87, %v83, -inf
    %101 = vmax.xlane.f32.xlu0 %v100
    %v102 = vpop.xlane.xlu0 %101
    %v103 = vsel %vm87, %v84, -inf
    %104 = vmax.xlane.f32.xlu0 %v103
    %v105 = vpop.xlane.xlu0 %104
    %v106 = vsel %vm87, %v85, -inf
    %107 = vmax.xlane.f32.xlu0 %v106
    %v108 = vpop.xlane.xlu0 %107
    %v109 = vsel %vm87, %v86, -inf
    %110 = vmax.xlane.f32.xlu0 %v109
    %v111 = vpop.xlane.xlu0 %110
    %vm112 = vcmask 4096
    %113 = vst.msk [vmem:[%s1] sm:$0x1f] %vm112, %v90
    %114 = vst.msk [vmem:[%s1 + $0x8] sm:$0x1f] %vm112, %v93
    %115 = vst.msk [vmem:[%s1 + $0x10] sm:$0x1f] %vm112, %v96
    %116 = vst.msk [vmem:[%s1 + $0x18] sm:$0x1f] %vm112, %v99
    %117 = vst.msk [vmem:[%s1 + $0x20] sm:$0x1f] %vm112, %v102
    %118 = vst.msk [vmem:[%s1 + $0x28] sm:$0x1f] %vm112, %v105
    %119 = vst.msk [vmem:[%s1 + $0x30] sm:$0x1f] %vm112, %v108
    %120 = vst.msk [vmem:[%s1 + $0x38] sm:$0x1f] %vm112, %v111
    %vm121 = vcmask 45080
    %v122 = vsel %vm121, %v79, -inf
    %123 = vmax.xlane.f32.xlu0 %v122
    %v124 = vpop.xlane.xlu0 %123
    %v125 = vsel %vm121, %v80, -inf
    %126 = vmax.xlane.f32.xlu0 %v125
    %v127 = vpop.xlane.xlu0 %126
    %v128 = vsel %vm121, %v81, -inf
    %129 = vmax.xlane.f32.xlu0 %v128
    %v130 = vpop.xlane.xlu0 %129
    %v131 = vsel %vm121, %v82, -inf
    %132 = vmax.xlane.f32.xlu0 %v131
    %v133 = vpop.xlane.xlu0 %132
    %v134 = vsel %vm121, %v83, -inf
    %135 = vmax.xlane.f32.xlu0 %v134
    %v136 = vpop.xlane.xlu0 %135
    %v137 = vsel %vm121, %v84, -inf
    %138 = vmax.xlane.f32.xlu0 %v137
    %v139 = vpop.xlane.xlu0 %138
    %v140 = vsel %vm121, %v85, -inf
    %141 = vmax.xlane.f32.xlu0 %v140
    %v142 = vpop.xlane.xlu0 %141
    %v143 = vsel %vm121, %v86, -inf
    %144 = vmax.xlane.f32.xlu0 %v143
    %v145 = vpop.xlane.xlu0 %144
    %vm146 = vcmask 12296
    %147 = vst.msk [vmem:[%s1] sm:$0x1f] %vm146, %v124
    %148 = vst.msk [vmem:[%s1 + $0x8] sm:$0x1f] %vm146, %v127
    %149 = vst.msk [vmem:[%s1 + $0x10] sm:$0x1f] %vm146, %v130
    %150 = vst.msk [vmem:[%s1 + $0x18] sm:$0x1f] %vm146, %v133
    %151 = vst.msk [vmem:[%s1 + $0x20] sm:$0x1f] %vm146, %v136
    %152 = vst.msk [vmem:[%s1 + $0x28] sm:$0x1f] %vm146, %v139
    %153 = vst.msk [vmem:[%s1 + $0x30] sm:$0x1f] %vm146, %v142
    %154 = vst.msk [vmem:[%s1 + $0x38] sm:$0x1f] %vm146, %v145
    %vm155 = vcmask 69680
    %v156 = vsel %vm155, %v79, -inf
    %157 = vmax.xlane.f32.xlu0 %v156
    %v158 = vpop.xlane.xlu0 %157
    %v159 = vsel %vm155, %v80, -inf
    %160 = vmax.xlane.f32.xlu0 %v159
    %v161 = vpop.xlane.xlu0 %160
    %v162 = vsel %vm155, %v81, -inf
    %163 = vmax.xlane.f32.xlu0 %v162
    %v164 = vpop.xlane.xlu0 %163
    %v165 = vsel %vm155, %v82, -inf
    %166 = vmax.xlane.f32.xlu0 %v165
    %v167 = vpop.xlane.xlu0 %166
    %v168 = vsel %vm155, %v83, -inf
    %169 = vmax.xlane.f32.xlu0 %v168
    %v170 = vpop.xlane.xlu0 %169
    %v171 = vsel %vm155, %v84, -inf
    %172 = vmax.xlane.f32.xlu0 %v171
    %v173 = vpop.xlane.xlu0 %172
    %v174 = vsel %vm155, %v85, -inf
    %175 = vmax.xlane.f32.xlu0 %v174
    %v176 = vpop.xlane.xlu0 %175
    %v177 = vsel %vm155, %v86, -inf
    %178 = vmax.xlane.f32.xlu0 %v177
    %v179 = vpop.xlane.xlu0 %178
    %vm180 = vcmask 20496
    %181 = vst.msk [vmem:[%s1] sm:$0x1f] %vm180, %v158
    %182 = vst.msk [vmem:[%s1 + $0x8] sm:$0x1f] %vm180, %v161
    %183 = vst.msk [vmem:[%s1 + $0x10] sm:$0x1f] %vm180, %v164
    %184 = vst.msk [vmem:[%s1 + $0x18] sm:$0x1f] %vm180, %v167
    %185 = vst.msk [vmem:[%s1 + $0x20] sm:$0x1f] %vm180, %v170
    %186 = vst.msk [vmem:[%s1 + $0x28] sm:$0x1f] %vm180, %v173
    %187 = vst.msk [vmem:[%s1 + $0x30] sm:$0x1f] %vm180, %v176
    %188 = vst.msk [vmem:[%s1 + $0x38] sm:$0x1f] %vm180, %v179
    %vm189 = vcmask 94280
    %v190 = vsel %vm189, %v79, -inf
    %191 = vmax.xlane.f32.xlu0 %v190
    %v192 = vpop.xlane.xlu0 %191
    %v193 = vsel %vm189, %v80, -inf
    %194 = vmax.xlane.f32.xlu0 %v193
    %v195 = vpop.xlane.xlu0 %194
    %v196 = vsel %vm189, %v81, -inf
    %197 = vmax.xlane.f32.xlu0 %v196
    %v198 = vpop.xlane.xlu0 %197
    %v199 = vsel %vm189, %v82, -inf
    %200 = vmax.xlane.f32.xlu0 %v199
    %v201 = vpop.xlane.xlu0 %200
    %v202 = vsel %vm189, %v83, -inf
    %203 = vmax.xlane.f32.xlu0 %v202
    %v204 = vpop.xlane.xlu0 %203
    %v205 = vsel %vm189, %v84, -inf
    %206 = vmax.xlane.f32.xlu0 %v205
    %v207 = vpop.xlane.xlu0 %206
    %v208 = vsel %vm189, %v85, -inf
    %209 = vmax.xlane.f32.xlu0 %v208
    %v210 = vpop.xlane.xlu0 %209
    %v211 = vsel %vm189, %v86, -inf
    %212 = vmax.xlane.f32.xlu0 %v211
    %v213 = vpop.xlane.xlu0 %212
    %vm214 = vcmask 28696
    %215 = vst.msk [vmem:[%s1] sm:$0x1f] %vm214, %v192
    %216 = vst.msk [vmem:[%s1 + $0x8] sm:$0x1f] %vm214, %v195
    %217 = vst.msk [vmem:[%s1 + $0x10] sm:$0x1f] %vm214, %v198
    %218 = vst.msk [vmem:[%s1 + $0x18] sm:$0x1f] %vm214, %v201
    %219 = vst.msk [vmem:[%s1 + $0x20] sm:$0x1f] %vm214, %v204
    %220 = vst.msk [vmem:[%s1 + $0x28] sm:$0x1f] %vm214, %v207
    %221 = vst.msk [vmem:[%s1 + $0x30] sm:$0x1f] %vm214, %v210
    %222 = vst.msk [vmem:[%s1 + $0x38] sm:$0x1f] %vm214, %v213
    %vm223 = vcmask 118880
    %v224 = vsel %vm223, %v79, -inf
    %225 = vmax.xlane.f32.xlu0 %v224
    %v226 = vpop.xlane.xlu0 %225
    %v227 = vsel %vm223, %v80, -inf
    %228 = vmax.xlane.f32.xlu0 %v227
    %v229 = vpop.xlane.xlu0 %228
    %v230 = vsel %vm223, %v81, -inf
    %231 = vmax.xlane.f32.xlu0 %v230
    %v232 = vpop.xlane.xlu0 %231
    %v233 = vsel %vm223, %v82, -inf
    %234 = vmax.xlane.f32.xlu0 %v233
    %v235 = vpop.xlane.xlu0 %234
    %v236 = vsel %vm223, %v83, -inf
    %237 = vmax.xlane.f32.xlu0 %v236
    %v238 = vpop.xlane.xlu0 %237
    %v239 = vsel %vm223, %v84, -inf
    %240 = vmax.xlane.f32.xlu0 %v239
    %v241 = vpop.xlane.xlu0 %240
    %v242 = vsel %vm223, %v85, -inf
    %243 = vmax.xlane.f32.xlu0 %v242
    %v244 = vpop.xlane.xlu0 %243
    %v245 = vsel %vm223, %v86, -inf
    %246 = vmax.xlane.f32.xlu0 %v245
    %v247 = vpop.xlane.xlu0 %246
    %vm248 = vcmask 36896
    %249 = vst.msk [vmem:[%s1] sm:$0x1f] %vm248, %v226
    %250 = vst.msk [vmem:[%s1 + $0x8] sm:$0x1f] %vm248, %v229
    %251 = vst.msk [vmem:[%s1 + $0x10] sm:$0x1f] %vm248, %v232
    %252 = vst.msk [vmem:[%s1 + $0x18] sm:$0x1f] %vm248, %v235
    %253 = vst.msk [vmem:[%s1 + $0x20] sm:$0x1f] %vm248, %v238
    %254 = vst.msk [vmem:[%s1 + $0x28] sm:$0x1f] %vm248, %v241
    %255 = vst.msk [vmem:[%s1 + $0x30] sm:$0x1f] %vm248, %v244
    %256 = vst.msk [vmem:[%s1 + $0x38] sm:$0x1f] %vm248, %v247
    // Predicated region
    $region10: #{maxpool2d.1} parent=1 // pred_check
      _
    $region11: #{maxpool2d.1} parent=1 // pred_check_branch
      %258 = sbr.rel (0) target = $region13
    $region12: #{maxpool2d.1} parent=1 // pred_region
      _
    $region13: #{maxpool2d.1} parent=1 // pred_fallthru
      _
    // Predicated region
    $region14: #{maxpool2d.1} parent=1 // pred_check
      _
    $region15: #{maxpool2d.1} parent=1 // pred_check_branch
      %260 = sbr.rel (0) target = $region17
    $region16: #{maxpool2d.1} parent=1 // pred_region
      _
    $region17: #{maxpool2d.1} parent=1 // pred_fallthru
      _
    %261 = vsyncpa [#allocation3], 1

</llo_original>
